<compile_context>
chip_gen: v7x
topology: tpu7x:2x2x1
jax: 0.10.0
libtpu: 0.0.40
codegen_flags: <defaults>
</compile_context>

<pallas_src>
import functools

import jax
import jax.numpy as jnp
from jax.experimental import pallas as pl
from jax.experimental.pallas import tpu as pltpu

INPUT_DIM = 13           # wine dataset: 13 features
LATENT_DIM = 2
H1 = 64
H2 = 32

XZ_DIM = 16              # merged input: [x (13) | eps (2) | 0 (1)]
EPS_LO = INPUT_DIM       # eps lanes 13..14 of the merged input

# output slab lane layout: [recon (0..12) | mean (13..14) | log_var (15..16) | 0]
MEAN_LO = INPUT_DIM                  # 13
LV_LO = INPUT_DIM + LATENT_DIM      # 15
OUT_TOTAL = INPUT_DIM + 2 * LATENT_DIM   # 17 useful output columns
OUT_PAD = 128                            # lane-dense output slab width
SLAB_COLS = 128                          # lane-padded weight slab width


def _round_up(x, m):
    return (x + m - 1) // m * m


def _cdiv(a, b):
    return -(-a // b)


# ---- packed bf16 weight slab layout: name -> (row_offset, rows) ------------
# Every block spans all 128 lanes (unused lanes/rows are zero), K dims of the
# big layers are padded to 128 rows so activations stay 128 lanes wide.
_LAYOUT = {}
_off = 0
for _name, _rows in (
    ("W1", 16),    ("B1", 1),     # encoder_fc1: rows 0..12 real, 13..15 zero
    ("W2", 128),   ("B2", 1),     # encoder_fc2: rows 0..63 real
    ("WH", 128),   ("BH", 1),     # fused mean|log_var head -> lanes 13..16
    ("WD1", 2 * LATENT_DIM), ("BD1", 1),   # stacked [[dw1],[dw1]] (K=4)
    ("WD2", 128),  ("BD2", 1),    # decoder_fc2: rows 0..31 real
    ("WD3", 128),  ("BD3", 1),    # decoder_fc3 -> lanes 0..12
):
    _LAYOUT[_name] = (_off, _rows)
    _off = _round_up(_off + _rows, 16)     # 16-row alignment (bf16 sublane pack)
SLAB_ROWS = _round_up(_off, 16)            # 640 rows x 128 lanes x bf16 = 160 KiB


# ---- kernel ----------------------------------------------------------------
def _vae_kernel(xz_ref, w_ref, out_ref):
    f32 = jnp.float32
    bf16 = jnp.bfloat16

    def wslice(name):                       # full-width (rows, 128) bf16 block
        off, rows = _LAYOUT[name]
        return w_ref[off:off + rows, :]

    def bias(name):                         # (1, 128) f32 bias row
        off, _ = _LAYOUT[name]
        return w_ref[off:off + 1, :].astype(f32)

    xz = xz_ref[...]                        # (TB, 16) f32: [x | eps | 0]
    xz_b = xz.astype(bf16)

    # ---- encoder (bf16 MXU operands, f32 accumulation, f32 VPU math) ----
    h = jnp.dot(xz_b, wslice("W1"), preferred_element_type=f32) + bias("B1")
    h = jnp.maximum(h, 0.0)                 # (TB, 128); lanes 64..127 == 0
    h = jnp.dot(h.astype(bf16), wslice("W2"),
                preferred_element_type=f32) + bias("B2")
    h = jnp.maximum(h, 0.0)                 # (TB, 128); lanes 32..127 == 0

    # fused mean|log_var head, landing directly in output lanes 13..16
    head = jnp.dot(h.astype(bf16), wslice("WH"),
                   preferred_element_type=f32) + bias("BH")   # (TB, 128)

    # ---- reparameterize (f32) ----
    mean = head[:, MEAN_LO:MEAN_LO + LATENT_DIM]      # (TB, 2)
    log_var = head[:, LV_LO:LV_LO + LATENT_DIM]       # (TB, 2)
    eps = xz[:, EPS_LO:EPS_LO + LATENT_DIM]           # (TB, 2)
    eps_std = eps * jnp.exp(0.5 * log_var)            # eps * std

    # ---- decoder ----
    # decoder_fc1: z@dw1 == mean@dw1 + (eps*std)@dw1 -> one (TB,4)@(4,128)
    # MXU pass against the stacked [[dw1],[dw1]] slab block.
    z4 = jnp.concatenate([mean, eps_std], axis=1).astype(bf16)   # (TB, 4)
    d = jnp.dot(z4, wslice("WD1"), preferred_element_type=f32) + bias("BD1")
    d = jnp.maximum(d, 0.0)                 # (TB, 128); lanes 32..127 == 0
    d = jnp.dot(d.astype(bf16), wslice("WD2"),
                preferred_element_type=f32) + bias("BD2")
    d = jnp.maximum(d, 0.0)                 # (TB, 128); lanes 64..127 == 0
    recon = jnp.dot(d.astype(bf16), wslice("WD3"),
                    preferred_element_type=f32) + bias("BD3")    # lanes 0..12

    # recon occupies lanes 0..12, head occupies lanes 13..16, everything else
    # is exactly zero -> single aligned VPU add, single unmasked 128-lane store.
    out_ref[...] = recon + head


# ---- batch tiling -----------------------------------------------------------
def _pick_tiling(batch):
    """Returns (tile_b, padded_batch). tile_b multiple of 8, cap 2048, >=2 grid
    steps when possible (v7x megacore), padding waste capped at ~25%."""
    b8 = _round_up(max(int(batch), 1), 8)
    max_tile = 2048                       # sweepable; VMEM stays a few MiB
    min_steps = 2 if b8 >= 16 else 1
    steps = max(min_steps, _cdiv(b8, max_tile))
    while True:
        tile = _round_up(_cdiv(b8, steps), 8)
        padded = steps * tile
        if tile <= 8 or (padded - b8) * 4 <= padded:
            return tile, padded
        steps += 1


# ---- wrapper ----------------------------------------------------------------
@jax.jit
def vae_forward(x, eps, w_slab):
    """Runs the VAE forward pass. Returns (reconstruction, mean, log_var)."""
    B = x.shape[0]
    tile_b, bp = _pick_tiling(B)

    # Merge x and eps into one lane-padded (bp, 16) input (padding rows zero).
    xz = jnp.zeros((bp, XZ_DIM), jnp.float32)
    xz = xz.at[:B, :INPUT_DIM].set(x.astype(jnp.float32))
    xz = xz.at[:B, EPS_LO:EPS_LO + LATENT_DIM].set(eps.astype(jnp.float32))

    flops_per_row = 2 * (XZ_DIM * H1 + H1 * H2 + H2 * (2 * LATENT_DIM)
                         + 2 * LATENT_DIM * H2 + H2 * H1 + H1 * INPUT_DIM)
    cost = pl.CostEstimate(
        flops=bp * flops_per_row,
        transcendentals=bp * LATENT_DIM,
        bytes_accessed=(4 * bp * XZ_DIM + 2 * SLAB_ROWS * SLAB_COLS
                        + 4 * bp * OUT_PAD),
    )

    out = pl.pallas_call(
        _vae_kernel,
        out_shape=jax.ShapeDtypeStruct((bp, OUT_PAD), jnp.float32),
        grid=(bp // tile_b,),
        in_specs=[
            pl.BlockSpec((tile_b, XZ_DIM), lambda i: (i, 0)),
            # weights: same block every step -> loaded once, stays resident
            pl.BlockSpec((SLAB_ROWS, SLAB_COLS), lambda i: (0, 0)),
        ],
        out_specs=pl.BlockSpec((tile_b, OUT_PAD), lambda i: (i, 0)),
        compiler_params=pltpu.CompilerParams(
            dimension_semantics=("parallel",),
        ),
        cost_estimate=cost,
    )(xz, w_slab)

    recon = out[:B, 0:INPUT_DIM]
    mean = out[:B, MEAN_LO:MEAN_LO + LATENT_DIM]
    log_var = out[:B, LV_LO:LV_LO + LATENT_DIM]
    return recon, mean, log_var


# ---- parameter construction --------------------------------------------------
def init_params(key):
    """nn.Linear-style init: U(-1/sqrt(fan_in), 1/sqrt(fan_in)) for weight AND
    bias (PyTorch convention). Weights stored (in, out)."""
    specs = [("ew1", "eb1", INPUT_DIM, H1), ("ew2", "eb2", H1, H2),
             ("ewm", "ebm", H2, LATENT_DIM), ("ewv", "ebv", H2, LATENT_DIM),
             ("dw1", "db1", LATENT_DIM, H2), ("dw2", "db2", H2, H1),
             ("dw3", "db3", H1, INPUT_DIM)]
    params = {}
    keys = jax.random.split(key, 2 * len(specs))
    i = 0
    for wname, bname, fin, fout in specs:
        bound = 1.0 / float(fin) ** 0.5
        params[wname] = jax.random.uniform(keys[i], (fin, fout), jnp.float32,
                                           -bound, bound); i += 1
        params[bname] = jax.random.uniform(keys[i], (fout,), jnp.float32,
                                           -bound, bound); i += 1
    return params


def pack_params(params):
    """Pack all layers into one (SLAB_ROWS, 128) bf16 slab with the lane/row
    layout the kernel expects (all padding lanes/rows are exactly zero)."""
    slab = jnp.zeros((SLAB_ROWS, SLAB_COLS), jnp.float32)

    def setw(s, name, arr, row0=0, col0=0):
        o, _ = _LAYOUT[name]
        return s.at[o + row0:o + row0 + arr.shape[0],
                    col0:col0 + arr.shape[1]].set(arr)

    def setb(s, name, vec, col0=0):
        o, _ = _LAYOUT[name]
        return s.at[o, col0:col0 + vec.shape[0]].set(vec)

    slab = setw(slab, "W1", params["ew1"])                       # rows 0..12
    slab = setb(slab, "B1", params["eb1"])
    slab = setw(slab, "W2", params["ew2"])                       # rows 0..63
    slab = setb(slab, "B2", params["eb2"])
    # fused head -> output lanes: mean at 13..14, log_var at 15..16
    slab = setw(slab, "WH", params["ewm"], col0=MEAN_LO)
    slab = setw(slab, "WH", params["ewv"], col0=LV_LO)
    slab = setb(slab, "BH", params["ebm"], col0=MEAN_LO)
    slab = setb(slab, "BH", params["ebv"], col0=LV_LO)
    # decoder_fc1 stacked twice: z@dw1 == mean@dw1 + (eps*std)@dw1
    slab = setw(slab, "WD1", params["dw1"], row0=0)
    slab = setw(slab, "WD1", params["dw1"], row0=LATENT_DIM)
    slab = setb(slab, "BD1", params["db1"])
    slab = setw(slab, "WD2", params["dw2"])
    slab = setb(slab, "BD2", params["db2"])
    slab = setw(slab, "WD3", params["dw3"])                      # lanes 0..12
    slab = setb(slab, "BD3", params["db3"])
    return slab.astype(jnp.bfloat16)


# ---- references --------------------------------------------------------------
def vae_reference(x, eps, params):
    """Pure-f32 reference (PyTorch-module semantics)."""
    relu = jax.nn.relu
    h = relu(x @ params["ew1"] + params["eb1"])
    h = relu(h @ params["ew2"] + params["eb2"])
    mean = h @ params["ewm"] + params["ebm"]
    log_var = h @ params["ewv"] + params["ebv"]
    z = mean + eps * jnp.exp(0.5 * log_var)
    d = relu(z @ params["dw1"] + params["db1"])
    d = relu(d @ params["dw2"] + params["db2"])
    recon = d @ params["dw3"] + params["db3"]
    return recon, mean, log_var


def vae_reference_bf16(x, eps, params):
    """Mixed-precision reference that mirrors the kernel's bf16-operand /
    f32-accumulate matmuls exactly (tight correctness check)."""
    f32, bf = jnp.float32, jnp.bfloat16
    relu = jax.nn.relu

    def mm(a, w):
        return jnp.dot(a.astype(bf), w.astype(bf), preferred_element_type=f32)

    def b(v):
        return v.astype(bf).astype(f32)

    h = relu(mm(x, params["ew1"]) + b(params["eb1"]))
    h = relu(mm(h, params["ew2"]) + b(params["eb2"]))
    mean = mm(h, params["ewm"]) + b(params["ebm"])
    log_var = mm(h, params["ewv"]) + b(params["ebv"])
    eps_std = eps * jnp.exp(0.5 * log_var)
    d = relu(mm(mean, params["dw1"]) + mm(eps_std, params["dw1"])
             + b(params["db1"]))
    d = relu(mm(d, params["dw2"]) + b(params["db2"]))
    recon = mm(d, params["dw3"]) + b(params["db3"])
    return recon, mean, log_var


if __name__ == "__main__":
    key = jax.random.PRNGKey(0)
    k_param, k_x, k_eps = jax.random.split(key, 3)

    B = 178   # the wine dataset has 178 rows -> exercises padding + 2-step grid
    params = init_params(k_param)
    w_slab = pack_params(params)
    x = jax.random.normal(k_x, (B, INPUT_DIM), dtype=jnp.float32)
    # eps corresponds to torch.randn_like(std) in reparameterize()
    eps = jax.random.normal(k_eps, (B, LATENT_DIM), dtype=jnp.float32)

    recon, mean, log_var = vae_forward(x, eps, w_slab)
    jax.block_until_ready((recon, mean, log_var))

    assert recon.shape == (B, INPUT_DIM)
    assert mean.shape == (B, LATENT_DIM)
    assert log_var.shape == (B, LATENT_DIM)

    # Tight check vs. a reference that mirrors the kernel's bf16/f32 math.
    r16, m16, lv16 = vae_reference_bf16(x, eps, params)
    assert jnp.allclose(recon, r16, atol=1e-3, rtol=1e-3)
    assert jnp.allclose(mean, m16, atol=1e-3, rtol=1e-3)
    assert jnp.allclose(log_var, lv16, atol=1e-3, rtol=1e-3)

    # Looser check vs. the pure-f32 module semantics (bf16 MXU operands).
    r32, m32, lv32 = vae_reference(x, eps, params)
    assert jnp.allclose(recon, r32, atol=3e-2, rtol=3e-2)
    assert jnp.allclose(mean, m32, atol=3e-2, rtol=3e-2)
    assert jnp.allclose(log_var, lv32, atol=3e-2, rtol=3e-2)

    print("KERNEL_OK")
</pallas_src>

<mosaic_0001>
module attributes {stable_mosaic.version = 11 : i64} {
  func.func @_vae_kernel(%arg0: i32, %arg1: memref<96x16xf32, #tpu.memory_space<vmem>>, %arg2: memref<640x128xbf16, #tpu.memory_space<vmem>>, %arg3: memref<96x128xf32, #tpu.memory_space<vmem>>) attributes {dimension_semantics = [#tpu.dimension_semantics<parallel>], iteration_bounds = array<i64: 2>, scalar_prefetch = 0 : i64, scratch_operands = 0 : i64, tpu.core_type = #tpu.core_type<tc>, window_params = [{transform_indices = @transform_0, window_bounds = array<i64: 96, 16>}, {pipeline_mode = #tpu.pipeline_mode<synchronous>, transform_indices = @transform_1, window_bounds = array<i64: 640, 128>}, {transform_indices = @transform_2, window_bounds = array<i64: 96, 128>}]} {
    %c0 = arith.constant 0 : index
    %c0_0 = arith.constant 0 : index
    %0 = vector.load %arg1[%c0, %c0_0] : memref<96x16xf32, #tpu.memory_space<vmem>>, vector<96x16xf32>
    %1 = arith.truncf %0 : vector<96x16xf32> to vector<96x16xbf16>
    %c0_1 = arith.constant 0 : index
    %c0_2 = arith.constant 0 : index
    %2 = vector.load %arg2[%c0_1, %c0_2] : memref<640x128xbf16, #tpu.memory_space<vmem>>, vector<16x128xbf16>
    %cst = arith.constant dense<0.000000e+00> : vector<96x128xf32>
    %3 = tpu.matmul %1, %2, %cst {dimension_numbers = #tpu.dot_dimension_numbers<[1], [0], [0], [1], [0, 0, 1, 1], [], []>} : vector<96x16xbf16>, vector<16x128xbf16>, vector<96x128xf32> -> vector<96x128xf32>
    %c16 = arith.constant 16 : index
    %c0_3 = arith.constant 0 : index
    %4 = vector.load %arg2[%c16, %c0_3] : memref<640x128xbf16, #tpu.memory_space<vmem>>, vector<1x128xbf16>
    %5 = arith.extf %4 : vector<1x128xbf16> to vector<1x128xf32>
    %6 = vector.broadcast %5 : vector<1x128xf32> to vector<96x128xf32>
    %7 = arith.addf %3, %6 : vector<96x128xf32>
    %cst_4 = arith.constant 0.000000e+00 : f32
    %8 = vector.broadcast %cst_4 : f32 to vector<96x128xf32>
    %9 = arith.maximumf %7, %8 : vector<96x128xf32>
    %10 = arith.truncf %9 : vector<96x128xf32> to vector<96x128xbf16>
    %c32 = arith.constant 32 : index
    %c0_5 = arith.constant 0 : index
    %11 = vector.load %arg2[%c32, %c0_5] : memref<640x128xbf16, #tpu.memory_space<vmem>>, vector<128x128xbf16>
    %cst_6 = arith.constant dense<0.000000e+00> : vector<96x128xf32>
    %12 = tpu.matmul %10, %11, %cst_6 {dimension_numbers = #tpu.dot_dimension_numbers<[1], [0], [0], [1], [0, 0, 1, 1], [], []>} : vector<96x128xbf16>, vector<128x128xbf16>, vector<96x128xf32> -> vector<96x128xf32>
    %c160 = arith.constant 160 : index
    %c0_7 = arith.constant 0 : index
    %13 = vector.load %arg2[%c160, %c0_7] : memref<640x128xbf16, #tpu.memory_space<vmem>>, vector<1x128xbf16>
    %14 = arith.extf %13 : vector<1x128xbf16> to vector<1x128xf32>
    %15 = vector.broadcast %14 : vector<1x128xf32> to vector<96x128xf32>
    %16 = arith.addf %12, %15 : vector<96x128xf32>
    %cst_8 = arith.constant 0.000000e+00 : f32
    %17 = vector.broadcast %cst_8 : f32 to vector<96x128xf32>
    %18 = arith.maximumf %16, %17 : vector<96x128xf32>
    %19 = arith.truncf %18 : vector<96x128xf32> to vector<96x128xbf16>
    %c176 = arith.constant 176 : index
    %c0_9 = arith.constant 0 : index
    %20 = vector.load %arg2[%c176, %c0_9] : memref<640x128xbf16, #tpu.memory_space<vmem>>, vector<128x128xbf16>
    %cst_10 = arith.constant dense<0.000000e+00> : vector<96x128xf32>
    %21 = tpu.matmul %19, %20, %cst_10 {dimension_numbers = #tpu.dot_dimension_numbers<[1], [0], [0], [1], [0, 0, 1, 1], [], []>} : vector<96x128xbf16>, vector<128x128xbf16>, vector<96x128xf32> -> vector<96x128xf32>
    %c304 = arith.constant 304 : index
    %c0_11 = arith.constant 0 : index
    %22 = vector.load %arg2[%c304, %c0_11] : memref<640x128xbf16, #tpu.memory_space<vmem>>, vector<1x128xbf16>
    %23 = arith.extf %22 : vector<1x128xbf16> to vector<1x128xf32>
    %24 = vector.broadcast %23 : vector<1x128xf32> to vector<96x128xf32>
    %25 = arith.addf %21, %24 : vector<96x128xf32>
    %26 = vector.extract_strided_slice %25 {offsets = [0, 13], sizes = [96, 2], strides = [1, 1]} : vector<96x128xf32> to vector<96x2xf32>
    %27 = vector.extract_strided_slice %25 {offsets = [0, 15], sizes = [96, 2], strides = [1, 1]} : vector<96x128xf32> to vector<96x2xf32>
    %28 = vector.extract_strided_slice %0 {offsets = [0, 13], sizes = [96, 2], strides = [1, 1]} : vector<96x16xf32> to vector<96x2xf32>
    %cst_12 = arith.constant 5.000000e-01 : f32
    %29 = vector.broadcast %cst_12 : f32 to vector<96x2xf32>
    %30 = arith.mulf %29, %27 : vector<96x2xf32>
    %31 = math.exp %30 : vector<96x2xf32>
    %32 = arith.mulf %28, %31 : vector<96x2xf32>
    %33 = tpu.concatenate %26, %32 in 1 : vector<96x2xf32>, vector<96x2xf32> -> vector<96x4xf32>
    %34 = arith.truncf %33 : vector<96x4xf32> to vector<96x4xbf16>
    %c320 = arith.constant 320 : index
    %c0_13 = arith.constant 0 : index
    %35 = vector.load %arg2[%c320, %c0_13] : memref<640x128xbf16, #tpu.memory_space<vmem>>, vector<4x128xbf16>
    %cst_14 = arith.constant dense<0.000000e+00> : vector<96x128xf32>
    %36 = tpu.matmul %34, %35, %cst_14 {dimension_numbers = #tpu.dot_dimension_numbers<[1], [0], [0], [1], [0, 0, 1, 1], [], []>} : vector<96x4xbf16>, vector<4x128xbf16>, vector<96x128xf32> -> vector<96x128xf32>
    %c336 = arith.constant 336 : index
    %c0_15 = arith.constant 0 : index
    %37 = vector.load %arg2[%c336, %c0_15] : memref<640x128xbf16, #tpu.memory_space<vmem>>, vector<1x128xbf16>
    %38 = arith.extf %37 : vector<1x128xbf16> to vector<1x128xf32>
    %39 = vector.broadcast %38 : vector<1x128xf32> to vector<96x128xf32>
    %40 = arith.addf %36, %39 : vector<96x128xf32>
    %cst_16 = arith.constant 0.000000e+00 : f32
    %41 = vector.broadcast %cst_16 : f32 to vector<96x128xf32>
    %42 = arith.maximumf %40, %41 : vector<96x128xf32>
    %43 = arith.truncf %42 : vector<96x128xf32> to vector<96x128xbf16>
    %c352 = arith.constant 352 : index
    %c0_17 = arith.constant 0 : index
    %44 = vector.load %arg2[%c352, %c0_17] : memref<640x128xbf16, #tpu.memory_space<vmem>>, vector<128x128xbf16>
    %cst_18 = arith.constant dense<0.000000e+00> : vector<96x128xf32>
    %45 = tpu.matmul %43, %44, %cst_18 {dimension_numbers = #tpu.dot_dimension_numbers<[1], [0], [0], [1], [0, 0, 1, 1], [], []>} : vector<96x128xbf16>, vector<128x128xbf16>, vector<96x128xf32> -> vector<96x128xf32>
    %c480 = arith.constant 480 : index
    %c0_19 = arith.constant 0 : index
    %46 = vector.load %arg2[%c480, %c0_19] : memref<640x128xbf16, #tpu.memory_space<vmem>>, vector<1x128xbf16>
    %47 = arith.extf %46 : vector<1x128xbf16> to vector<1x128xf32>
    %48 = vector.broadcast %47 : vector<1x128xf32> to vector<96x128xf32>
    %49 = arith.addf %45, %48 : vector<96x128xf32>
    %cst_20 = arith.constant 0.000000e+00 : f32
    %50 = vector.broadcast %cst_20 : f32 to vector<96x128xf32>
    %51 = arith.maximumf %49, %50 : vector<96x128xf32>
    %52 = arith.truncf %51 : vector<96x128xf32> to vector<96x128xbf16>
    %c496 = arith.constant 496 : index
    %c0_21 = arith.constant 0 : index
    %53 = vector.load %arg2[%c496, %c0_21] : memref<640x128xbf16, #tpu.memory_space<vmem>>, vector<128x128xbf16>
    %cst_22 = arith.constant dense<0.000000e+00> : vector<96x128xf32>
    %54 = tpu.matmul %52, %53, %cst_22 {dimension_numbers = #tpu.dot_dimension_numbers<[1], [0], [0], [1], [0, 0, 1, 1], [], []>} : vector<96x128xbf16>, vector<128x128xbf16>, vector<96x128xf32> -> vector<96x128xf32>
    %c624 = arith.constant 624 : index
    %c0_23 = arith.constant 0 : index
    %55 = vector.load %arg2[%c624, %c0_23] : memref<640x128xbf16, #tpu.memory_space<vmem>>, vector<1x128xbf16>
    %56 = arith.extf %55 : vector<1x128xbf16> to vector<1x128xf32>
    %57 = vector.broadcast %56 : vector<1x128xf32> to vector<96x128xf32>
    %58 = arith.addf %54, %57 : vector<96x128xf32>
    %59 = arith.addf %58, %25 : vector<96x128xf32>
    %c0_24 = arith.constant 0 : index
    %c0_25 = arith.constant 0 : index
    %60 = vector.load %arg3[%c0_24, %c0_25] : memref<96x128xf32, #tpu.memory_space<vmem>>, vector<96x128xf32>
    tpu.vector_store %arg3[%c0_24, %c0_25], %59 {strides = array<i32>} : memref<96x128xf32, #tpu.memory_space<vmem>>, vector<96x128xf32>,
    return
  }
  func.func @transform_0(%arg0: i32) -> (i32, i32) {
    %c0_i32 = arith.constant 0 : i32
    %c0_i32_0 = arith.constant 0 : i32
    return %arg0, %c0_i32 : i32, i32
  }
  func.func @transform_1(%arg0: i32) -> (i32, i32) {
    %c0_i32 = arith.constant 0 : i32
    %c0_i32_0 = arith.constant 0 : i32
    %c0_i32_1 = arith.constant 0 : i32
    return %c0_i32, %c0_i32_0 : i32, i32
  }
  func.func @transform_2(%arg0: i32) -> (i32, i32) {
    %c0_i32 = arith.constant 0 : i32
    %c0_i32_0 = arith.constant 0 : i32
    return %arg0, %c0_i32 : i32, i32
  }
}

</mosaic_0001>

<llo_original>
// kernel: vae_forward.1
$region0: #{vae_forward.1}
  #allocation0 [shape = 'u32[]', space=smem, size = 0x4, offset = 0x4, fixed_abs, tag = 'smem constant byte address 0x4 - core index']
  #allocation1 [shape = 'u32[144,128]{1,0:T(1,128)}', space=vmem, size = 0x12000, scoped, tag = 'internal scratch']
  %s0 = inlined_call_operand.vmem [shape: f32[192,16], index: 0, kind: input, shape index: {}]
  %s1 = inlined_call_operand.vmem [shape: bf16[640,128], index: 1, kind: input, shape index: {}]
  %s2 = inlined_call_operand.vmem [shape: f32[192,128], index: 2, kind: output, shape index: {}]
  %s3 = sld [smem:[#allocation0]]
  $region41: #{vae_forward.1} parent=0
    _
  %s5 = ssub.s32 1, %s3
  %s6 = scalar_select 0, %s5, %s3
  loop: start=0, step=1, limit=4
  $region2: #{vae_forward.1} parent=0 // loop_pre_header
    _
  $region3: #{vae_forward.1} parent=0 // loop_header
    %s8 = sphi 0, %s12
    %p9 = scmp.ge.s32.totalorder %s8, 4
    %s18 = sphi 0, %s20
    %s21 = sphi 0, %s18
    %s22 = sphi 0, %s21
    %s38 = sphi 0, %s22
    %s42 = sphi 0, %s42
    %s44 = sphi 0, %s42
    %s45 = sphi 0, %s44
    %s59 = sphi 0, %s45
    %s65 = sphi 0, %s67
    %s68 = sphi 0, %s65
    %s69 = sphi 0, %s68
    %s85 = sphi 0, %s69
  $region4: #{vae_forward.1} parent=0 // loop_header_branch
    %11 = sbr.rel (%p9) target = $region8
  $region5: #{vae_forward.1} parent=0 // loop_body
    %s13 = ssub.s32 %s8, 1
    %s14 = ssub.s32 %s8, 2
    %s15 = sadd.s32 %s8, 1
    %s16 = ssub.s32 %s8, %s15
    %p17 = scmp.eq.s32.totalorder %s16, 0
    %s19 = sadd.s32 %s18, 1
    %s20 = scalar_select %p17, %s18, %s19
    %p23 = pneg %p17
    %p24 = scmp.eq.s32.totalorder %s8, 1
    %p25 = por %p23, %p24
    %p26 = scmp.ne.s32.totalorder %s18, %s21
    %p27 = scmp.eq.s32.totalorder %s8, 0
    %p28 = por %p26, %p27
    %p29 = scmp.ne.s32.totalorder %s18, %s21
    %p30 = scmp.eq.s32.totalorder %s13, 1
    %p31 = por %p29, %p30
    %p32 = scmp.ne.s32.totalorder %s21, %s22
    %p33 = scmp.eq.s32.totalorder %s13, 0
    %p34 = por %p32, %p33
    %p35 = scmp.ne.s32.totalorder %s21, %s22
    %p36 = scmp.eq.s32.totalorder %s14, 1
    %p37 = por %p35, %p36
    %p39 = scmp.ne.s32.totalorder %s22, %s38
    %p40 = scmp.eq.s32.totalorder %s14, 0
    %p41 = por %p39, %p40
    %s43 = sadd.s32 %s42, 1
    %p46 = scmp.eq.s32.totalorder %s8, 1
    %p47 = scmp.ne.s32.totalorder %s42, %s44
    %p48 = scmp.eq.s32.totalorder %s8, 0
    %p49 = por %p47, %p48
    %p50 = scmp.ne.s32.totalorder %s42, %s44
    %p51 = scmp.eq.s32.totalorder %s13, 1
    %p52 = por %p50, %p51
    %p53 = scmp.ne.s32.totalorder %s44, %s45
    %p54 = scmp.eq.s32.totalorder %s13, 0
    %p55 = por %p53, %p54
    %p56 = scmp.ne.s32.totalorder %s44, %s45
    %p57 = scmp.eq.s32.totalorder %s14, 1
    %p58 = por %p56, %p57
    %p60 = scmp.ne.s32.totalorder %s45, %s59
    %p61 = scmp.eq.s32.totalorder %s14, 0
    %p62 = por %p60, %p61
    %s63 = ssub.s32 %s8, %s15
    %p64 = scmp.eq.s32.totalorder %s63, 0
    %s66 = sadd.s32 %s65, 1
    %s67 = scalar_select %p64, %s65, %s66
    %p70 = pneg %p64
    %p71 = scmp.eq.s32.totalorder %s8, 1
    %p72 = por %p70, %p71
    %p73 = scmp.ne.s32.totalorder %s65, %s68
    %p74 = scmp.eq.s32.totalorder %s8, 0
    %p75 = por %p73, %p74
    %p76 = scmp.ne.s32.totalorder %s65, %s68
    %p77 = scmp.eq.s32.totalorder %s13, 1
    %p78 = por %p76, %p77
    %p79 = scmp.ne.s32.totalorder %s68, %s69
    %p80 = scmp.eq.s32.totalorder %s13, 0
    %p81 = por %p79, %p80
    %p82 = scmp.ne.s32.totalorder %s68, %s69
    %p83 = scmp.eq.s32.totalorder %s14, 1
    %p84 = por %p82, %p83
    %p86 = scmp.ne.s32.totalorder %s69, %s85
    %p87 = scmp.eq.s32.totalorder %s14, 0
    %p88 = por %p86, %p87
    %p89 = scmp.le.s32.totalorder 1, %s8
    %p90 = scmp.lt.s32.totalorder %s8, 3
    %p91 = pnand %p89, %p90
    %p92 = pneg %p91
    // Predicated region
    $region9: #{vae_forward.1} parent=5 // pred_check
      _
    $region10: #{vae_forward.1} parent=5 // pred_check_branch
      %94 = sbr.rel (%p91) target = $region12
    $region11: #{vae_forward.1} parent=5 // pred_region
      %s95 = ssub.s32 %s8, 1
      // Predicated region
      $region13: #{vae_forward.1} parent=11 // pred_check
        %p96 = pneg %p55
      $region14: #{vae_forward.1} parent=11 // pred_check_branch
        %98 = sbr.rel (%p96) target = $region16
      $region15: #{vae_forward.1} parent=11 // pred_region
        _
      $region16: #{vae_forward.1} parent=11 // pred_fallthru
        _
    $region12: #{vae_forward.1} parent=5 // pred_fallthru
      _
    %p99 = scmp.lt.s32.totalorder %s8, 2
    // Predicated region
    $region17: #{vae_forward.1} parent=5 // pred_check
      %p100 = pneg %p99
    $region18: #{vae_forward.1} parent=5 // pred_check_branch
      %102 = sbr.rel (%p100) target = $region20
    $region19: #{vae_forward.1} parent=5 // pred_region
      // Predicated region
      $region21: #{vae_forward.1} parent=19 // pred_check
        %p103 = pneg %p28
      $region22: #{vae_forward.1} parent=19 // pred_check_branch
        %105 = sbr.rel (%p103) target = $region24
      $region23: #{vae_forward.1} parent=19 // pred_region
        %s106 = smul.u32 12, %s8
        %p107 = scmp.lt.s32.totalorder %s106, 23
        %s108 = scalar_select %p107, %s106, 23
        %s109 = smul.addr %s108, 8
        %s110 = scalar_lea.vmem %s0, %s109
        %s111 = smul.u32 12, %s8
      $region24: #{vae_forward.1} parent=19 // pred_fallthru
        _
    $region20: #{vae_forward.1} parent=5 // pred_fallthru
      _
    %p112 = scmp.le.s32.totalorder 1, %s8
    %p113 = scmp.lt.s32.totalorder %s8, 3
    %p114 = pnand %p112, %p113
    %p115 = pneg %p114
    // Predicated region
    $region25: #{vae_forward.1} parent=5 // pred_check
      _
    $region26: #{vae_forward.1} parent=5 // pred_check_branch
      %117 = sbr.rel (%p114) target = $region28
    $region27: #{vae_forward.1} parent=5 // pred_region
      %s118 = ssub.s32 %s8, 1
      %s119 = smul.u32 12, %s13
      %p120 = scmp.lt.s32.totalorder %s119, 23
      %s121 = scalar_select %p120, %s119, 23
      %s122 = smul.addr %s121, 8
      %s123 = scalar_lea.vmem %s0, %s122
      %p124 = pneg %p34
      %p125 = pneg %p31
      %p126 = pneg %p55
      %p127 = pneg %p52
      %p128 = pneg %p81
      %p129 = pneg %p78
      %s130 = smul.u32 12, %s13
      %p131 = scmp.lt.s32.totalorder %s130, 23
      %s132 = scalar_select %p131, %s130, 23
      %s133 = smul.addr %s132, 8
      %s134 = scalar_lea.vmem %s2, %s133
      %s135 = smul.u32 12, %s13
      %p136 = scmp.lt.s32.totalorder %s135, 23
      %s137 = scalar_select %p136, %s135, 23
      %s138 = smul.addr %s137, 8
      %s139 = scalar_lea.vmem %s0, %s138
      %s140 = smul.u32 12, %s13
      %s141 = smul.u32 12, %s13
      %p142 = scmp.lt.s32.totalorder %s141, 23
      %s143 = scalar_select %p142, %s141, 23
      %s144 = smul.addr %s143, 8
      %s145 = scalar_lea.vmem %s2, %s144
      %s146 = smul.u32 12, %s13
      %v148 = vld [vmem:[%s139] sm:$0xff]
      %v149 = vld [vmem:[%s139 + $0x8] sm:$0xff]
      %v150 = vld [vmem:[%s139 + $0x10] sm:$0xff]
      %v151 = vld [vmem:[%s139 + $0x18] sm:$0xff]
      %v152 = vld [vmem:[%s139 + $0x20] sm:$0xff]
      %v153 = vld [vmem:[%s139 + $0x28] sm:$0xff]
      %v154 = vld [vmem:[%s139 + $0x30] sm:$0xff]
      %v155 = vld [vmem:[%s139 + $0x38] sm:$0xff]
      %v156 = vld [vmem:[%s139 + $0x40] sm:$0xff]
      %v157 = vld [vmem:[%s139 + $0x48] sm:$0xff]
      %v158 = vld [vmem:[%s139 + $0x50] sm:$0xff]
      %v159 = vld [vmem:[%s139 + $0x58] sm:$0xff]
      %v160 = vpack.c.bf16 %v149, %v148
      %v161 = vpack.c.bf16 %v151, %v150
      %v162 = vpack.c.bf16 %v153, %v152
      %v163 = vpack.c.bf16 %v155, %v154
      %v164 = vpack.c.bf16 %v157, %v156
      %v165 = vpack.c.bf16 %v159, %v158
      %v166 = vld [vmem:[%s1] sm:$0xf]
      %v167 = vld [vmem:[%s1 + $0x4] sm:$0xf]
      %v168 = vld [vmem:[%s1 + $0x8] sm:$0x1]
      %v169 = vunpack.c.l.bf16 %v168
      %v170 = vlaneseq
      %v171 = vshrl.u32 %v170, 7
      %v172 = vsub.s32 0, %v171
      %v173 = vrot.slane %v169, %v172
      %v176 = vunpack.c.l.b16 %v166
      %v177 = vunpack.c.l.b16 %v167
      %v178 = vpack.c.b16 %v177, %v176
      %vm180 = vcmask 130048
      %v182 = vsel %vm180, %v160, 0
      %v185 = vsel %vm180, %v161, 0
      %v188 = vsel %vm180, %v162, 0
      %v191 = vsel %vm180, %v163, 0
      %v194 = vsel %vm180, %v164, 0
      %v197 = vsel %vm180, %v165, 0
      %199 = vmatprep.subr.bf16.mxu0 0
      %200 = vmatpush1.bf16.msra.mxu0 %v178
      %201 = vmatprep.subr.bf16.mxu0 0
      %202 = vmatpush1.bf16.msra.mxu0 0
      %203 = vmatprep.subr.bf16.mxu0 0
      %204 = vmatpush1.bf16.msra.mxu0 0
      %205 = vmatprep.subr.bf16.mxu0 0
      %206 = vmatpush1.bf16.msra.mxu0 0
      %207 = vmatprep.subr.bf16.mxu0 0
      %208 = vmatpush1.bf16.msra.mxu0 0
      %209 = vmatprep.subr.bf16.mxu0 0
      %210 = vmatpush1.bf16.msra.mxu0 0
      %211 = vmatprep.subr.bf16.mxu0 0
      %212 = vmatpush1.bf16.msra.mxu0 0
      %213 = vmatprep.subr.bf16.mxu0 0
      %214 = vmatpush1.bf16.msra.mxu0 0
      %215 = vmatprep.subr.bf16.mxu0 0
      %216 = vmatpush1.bf16.msra.mxu0 0
      %217 = vmatprep.subr.bf16.mxu0 0
      %218 = vmatpush1.bf16.msra.mxu0 0
      %219 = vmatprep.subr.bf16.mxu0 0
      %220 = vmatpush1.bf16.msra.mxu0 0
      %221 = vmatprep.subr.bf16.mxu0 0
      %222 = vmatpush1.bf16.msra.mxu0 0
      %223 = vmatprep.subr.bf16.mxu0 0
      %224 = vmatpush1.bf16.msra.mxu0 0
      %225 = vmatprep.subr.bf16.mxu0 0
      %226 = vmatpush1.bf16.msra.mxu0 0
      %227 = vmatprep.subr.bf16.mxu0 0
      %228 = vmatpush1.bf16.msra.mxu0 0
      %229 = vmatprep.subr.bf16.mxu0 0
      %230 = vmatpush1.bf16.msra.mxu0 0
      %231 = vmatprep.mubr.bf16.mxu0 0
      %232 = vmatmul.mubr.bf16.gmra.mrb[0].mxu0 %v182
      %v233 = vpop.f32.mrb[0].mxu0
      %v234 = vadd.f32 %v173, %v233
      %v235 = vpop.f32.mrb[0].mxu0
      %v236 = vpop.f32.mrb[0].mxu0
      %v237 = vadd.f32 %v173, %v236
      %v238 = vpop.f32.mrb[0].mxu0
      %239 = vmatprep.mubr.bf16.mxu0 0
      %240 = vmatmul.mubr.bf16.gmra.mrb[0].mxu0 %v185
      %v241 = vpop.f32.mrb[0].mxu0
      %v242 = vadd.f32 %v173, %v241
      %v243 = vpop.f32.mrb[0].mxu0
      %v244 = vpop.f32.mrb[0].mxu0
      %v245 = vadd.f32 %v173, %v244
      %v246 = vpop.f32.mrb[0].mxu0
      %247 = vmatprep.mubr.bf16.mxu0 0
      %248 = vmatmul.mubr.bf16.gmra.mrb[0].mxu0 %v188
      %v249 = vpop.f32.mrb[0].mxu0
      %v250 = vadd.f32 %v173, %v249
      %v251 = vpop.f32.mrb[0].mxu0
      %v252 = vpop.f32.mrb[0].mxu0
      %v253 = vadd.f32 %v173, %v252
      %v254 = vpop.f32.mrb[0].mxu0
      %255 = vmatprep.mubr.bf16.mxu0 0
      %256 = vmatmul.mubr.bf16.gmra.mrb[0].mxu0 %v191
      %v257 = vpop.f32.mrb[0].mxu0
      %v258 = vadd.f32 %v173, %v257
      %v259 = vpop.f32.mrb[0].mxu0
      %v260 = vpop.f32.mrb[0].mxu0
      %v261 = vadd.f32 %v173, %v260
      %v262 = vpop.f32.mrb[0].mxu0
      %263 = vmatprep.mubr.bf16.mxu0 0
      %264 = vmatmul.mubr.bf16.gmra.mrb[0].mxu0 %v194
      %v265 = vpop.f32.mrb[0].mxu0
      %v266 = vadd.f32 %v173, %v265
      %v267 = vpop.f32.mrb[0].mxu0
      %v268 = vpop.f32.mrb[0].mxu0
      %v269 = vadd.f32 %v173, %v268
      %v270 = vpop.f32.mrb[0].mxu0
      %271 = vmatprep.mubr.bf16.mxu0 0
      %272 = vmatmul.mubr.bf16.gmra.mrb[0].mxu0 %v197
      %v273 = vpop.f32.mrb[0].mxu0
      %v274 = vadd.f32 %v173, %v273
      %v275 = vpop.f32.mrb[0].mxu0
      %v276 = vpop.f32.mrb[0].mxu0
      %v277 = vadd.f32 %v173, %v276
      %v278 = vpop.f32.mrb[0].mxu0
      %279 = vdwg.mxu0
      %v280 = vmax.f32 %v234, 0.0
      %v281 = vmax.f32 %v237, 0.0
      %v282 = vmax.f32 %v242, 0.0
      %v283 = vmax.f32 %v245, 0.0
      %v284 = vmax.f32 %v250, 0.0
      %v285 = vmax.f32 %v253, 0.0
      %v286 = vmax.f32 %v258, 0.0
      %v287 = vmax.f32 %v261, 0.0
      %v288 = vmax.f32 %v266, 0.0
      %v289 = vmax.f32 %v269, 0.0
      %v290 = vmax.f32 %v274, 0.0
      %v291 = vmax.f32 %v277, 0.0
      %v292 = vpack.c.bf16 %v281, %v280
      %v293 = vpack.c.bf16 %v283, %v282
      %v294 = vpack.c.bf16 %v285, %v284
      %v295 = vpack.c.bf16 %v287, %v286
      %v296 = vpack.c.bf16 %v289, %v288
      %v297 = vpack.c.bf16 %v291, %v290
      %v298 = vld [vmem:[%s1 + $0x10] sm:$0xf]
      %v299 = vld [vmem:[%s1 + $0x14] sm:$0xf]
      %v300 = vld [vmem:[%s1 + $0x18] sm:$0xf]
      %v301 = vld [vmem:[%s1 + $0x1c] sm:$0xf]
      %v302 = vld [vmem:[%s1 + $0x20] sm:$0xf]
      %v303 = vld [vmem:[%s1 + $0x24] sm:$0xf]
      %v304 = vld [vmem:[%s1 + $0x28] sm:$0xf]
      %v305 = vld [vmem:[%s1 + $0x2c] sm:$0xf]
      %v306 = vld [vmem:[%s1 + $0x30] sm:$0xf]
      %v307 = vld [vmem:[%s1 + $0x34] sm:$0xf]
      %v308 = vld [vmem:[%s1 + $0x38] sm:$0xf]
      %v309 = vld [vmem:[%s1 + $0x3c] sm:$0xf]
      %v310 = vld [vmem:[%s1 + $0x40] sm:$0xf]
      %v311 = vld [vmem:[%s1 + $0x44] sm:$0xf]
      %v312 = vld [vmem:[%s1 + $0x48] sm:$0xf]
      %v313 = vld [vmem:[%s1 + $0x4c] sm:$0xf]
      %v314 = vld [vmem:[%s1 + $0x50] sm:$0x1]
      %v315 = vunpack.c.l.bf16 %v314
      %v316 = vlaneseq
      %v317 = vshrl.u32 %v316, 7
      %v318 = vsub.s32 0, %v317
      %v319 = vrot.slane %v315, %v318
      %v336 = vunpack.c.l.b16 %v298
      %v337 = vunpack.c.l.b16 %v299
      %v338 = vunpack.c.l.b16 %v300
      %v339 = vunpack.c.l.b16 %v301
      %v340 = vunpack.c.l.b16 %v302
      %v341 = vunpack.c.l.b16 %v303
      %v342 = vunpack.c.l.b16 %v304
      %v343 = vunpack.c.l.b16 %v305
      %v344 = vunpack.c.l.b16 %v306
      %v345 = vunpack.c.l.b16 %v307
      %v346 = vunpack.c.l.b16 %v308
      %v347 = vunpack.c.l.b16 %v309
      %v348 = vunpack.c.l.b16 %v310
      %v349 = vunpack.c.l.b16 %v311
      %v350 = vunpack.c.l.b16 %v312
      %v351 = vunpack.c.l.b16 %v313
      %v352 = vpack.c.b16 %v337, %v336
      %v353 = vpack.c.b16 %v339, %v338
      %v354 = vpack.c.b16 %v341, %v340
      %v355 = vpack.c.b16 %v343, %v342
      %v356 = vpack.c.b16 %v345, %v344
      %v357 = vpack.c.b16 %v347, %v346
      %v358 = vpack.c.b16 %v349, %v348
      %v359 = vpack.c.b16 %v351, %v350
      %368 = vmatprep.subr.bf16.mxu0 0
      %369 = vmatpush1.bf16.msra.mxu0 %v352
      %370 = vmatprep.subr.bf16.mxu0 0
      %371 = vmatpush1.bf16.msra.mxu0 %v353
      %372 = vmatprep.subr.bf16.mxu0 0
      %373 = vmatpush1.bf16.msra.mxu0 %v354
      %374 = vmatprep.subr.bf16.mxu0 0
      %375 = vmatpush1.bf16.msra.mxu0 %v355
      %376 = vmatprep.subr.bf16.mxu0 0
      %377 = vmatpush1.bf16.msra.mxu0 %v356
      %378 = vmatprep.subr.bf16.mxu0 0
      %379 = vmatpush1.bf16.msra.mxu0 %v357
      %380 = vmatprep.subr.bf16.mxu0 0
      %381 = vmatpush1.bf16.msra.mxu0 %v358
      %382 = vmatprep.subr.bf16.mxu0 0
      %383 = vmatpush1.bf16.msra.mxu0 %v359
      %384 = vmatprep.subr.bf16.mxu0 0
      %385 = vmatpush1.bf16.msra.mxu0 0
      %386 = vmatprep.subr.bf16.mxu0 0
      %387 = vmatpush1.bf16.msra.mxu0 0
      %388 = vmatprep.subr.bf16.mxu0 0
      %389 = vmatpush1.bf16.msra.mxu0 0
      %390 = vmatprep.subr.bf16.mxu0 0
      %391 = vmatpush1.bf16.msra.mxu0 0
      %392 = vmatprep.subr.bf16.mxu0 0
      %393 = vmatpush1.bf16.msra.mxu0 0
      %394 = vmatprep.subr.bf16.mxu0 0
      %395 = vmatpush1.bf16.msra.mxu0 0
      %396 = vmatprep.subr.bf16.mxu0 0
      %397 = vmatpush1.bf16.msra.mxu0 0
      %398 = vmatprep.subr.bf16.mxu0 0
      %399 = vmatpush1.bf16.msra.mxu0 0
      %400 = vmatprep.mubr.bf16.mxu0 0
      %401 = vmatmul.mubr.bf16.gmra.mrb[0].mxu0 %v292
      %v402 = vpop.f32.mrb[0].mxu0
      %v403 = vadd.f32 %v319, %v402
      %v404 = vpop.f32.mrb[0].mxu0
      %v405 = vpop.f32.mrb[0].mxu0
      %v406 = vadd.f32 %v319, %v405
      %v407 = vpop.f32.mrb[0].mxu0
      %408 = vmatprep.mubr.bf16.mxu0 0
      %409 = vmatmul.mubr.bf16.gmra.mrb[0].mxu0 %v293
      %v410 = vpop.f32.mrb[0].mxu0
      %v411 = vadd.f32 %v319, %v410
      %v412 = vpop.f32.mrb[0].mxu0
      %v413 = vpop.f32.mrb[0].mxu0
      %v414 = vadd.f32 %v319, %v413
      %v415 = vpop.f32.mrb[0].mxu0
      %416 = vmatprep.mubr.bf16.mxu0 0
      %417 = vmatmul.mubr.bf16.gmra.mrb[0].mxu0 %v294
      %v418 = vpop.f32.mrb[0].mxu0
      %v419 = vadd.f32 %v319, %v418
      %v420 = vpop.f32.mrb[0].mxu0
      %v421 = vpop.f32.mrb[0].mxu0
      %v422 = vadd.f32 %v319, %v421
      %v423 = vpop.f32.mrb[0].mxu0
      %424 = vmatprep.mubr.bf16.mxu0 0
      %425 = vmatmul.mubr.bf16.gmra.mrb[0].mxu0 %v295
      %v426 = vpop.f32.mrb[0].mxu0
      %v427 = vadd.f32 %v319, %v426
      %v428 = vpop.f32.mrb[0].mxu0
      %v429 = vpop.f32.mrb[0].mxu0
      %v430 = vadd.f32 %v319, %v429
      %v431 = vpop.f32.mrb[0].mxu0
      %432 = vmatprep.mubr.bf16.mxu0 0
      %433 = vmatmul.mubr.bf16.gmra.mrb[0].mxu0 %v296
      %v434 = vpop.f32.mrb[0].mxu0
      %v435 = vadd.f32 %v319, %v434
      %v436 = vpop.f32.mrb[0].mxu0
      %v437 = vpop.f32.mrb[0].mxu0
      %v438 = vadd.f32 %v319, %v437
      %v439 = vpop.f32.mrb[0].mxu0
      %440 = vmatprep.mubr.bf16.mxu0 0
      %441 = vmatmul.mubr.bf16.gmra.mrb[0].mxu0 %v297
      %v442 = vpop.f32.mrb[0].mxu0
      %v443 = vadd.f32 %v319, %v442
      %v444 = vpop.f32.mrb[0].mxu0
      %v445 = vpop.f32.mrb[0].mxu0
      %v446 = vadd.f32 %v319, %v445
      %v447 = vpop.f32.mrb[0].mxu0
      %448 = vdwg.mxu0
      %v449 = vmax.f32 %v403, 0.0
      %v450 = vmax.f32 %v406, 0.0
      %v451 = vmax.f32 %v411, 0.0
      %v452 = vmax.f32 %v414, 0.0
      %v453 = vmax.f32 %v419, 0.0
      %v454 = vmax.f32 %v422, 0.0
      %v455 = vmax.f32 %v427, 0.0
      %v456 = vmax.f32 %v430, 0.0
      %v457 = vmax.f32 %v435, 0.0
      %v458 = vmax.f32 %v438, 0.0
      %v459 = vmax.f32 %v443, 0.0
      %v460 = vmax.f32 %v446, 0.0
      %v461 = vpack.c.bf16 %v450, %v449
      %v462 = vpack.c.bf16 %v452, %v451
      %v463 = vpack.c.bf16 %v454, %v453
      %v464 = vpack.c.bf16 %v456, %v455
      %v465 = vpack.c.bf16 %v458, %v457
      %v466 = vpack.c.bf16 %v460, %v459
      %v467 = vld [vmem:[%s1 + $0x58] sm:$0xf]
      %v468 = vld [vmem:[%s1 + $0x5c] sm:$0xf]
      %v469 = vld [vmem:[%s1 + $0x60] sm:$0xf]
      %v470 = vld [vmem:[%s1 + $0x64] sm:$0xf]
      %v471 = vld [vmem:[%s1 + $0x68] sm:$0xf]
      %v472 = vld [vmem:[%s1 + $0x6c] sm:$0xf]
      %v473 = vld [vmem:[%s1 + $0x70] sm:$0xf]
      %v474 = vld [vmem:[%s1 + $0x74] sm:$0xf]
      %v475 = vld [vmem:[%s1 + $0x78] sm:$0xf]
      %v476 = vld [vmem:[%s1 + $0x7c] sm:$0xf]
      %v477 = vld [vmem:[%s1 + $0x80] sm:$0xf]
      %v478 = vld [vmem:[%s1 + $0x84] sm:$0xf]
      %v479 = vld [vmem:[%s1 + $0x88] sm:$0xf]
      %v480 = vld [vmem:[%s1 + $0x8c] sm:$0xf]
      %v481 = vld [vmem:[%s1 + $0x90] sm:$0xf]
      %v482 = vld [vmem:[%s1 + $0x94] sm:$0xf]
      %v483 = vld [vmem:[%s1 + $0x98] sm:$0x1]
      %v484 = vunpack.c.l.bf16 %v483
      %v485 = vlaneseq
      %v486 = vshrl.u32 %v485, 7
      %v487 = vsub.s32 0, %v486
      %v488 = vrot.slane %v484, %v487
      %v505 = vunpack.c.l.b16 %v467
      %v506 = vunpack.c.l.b16 %v468
      %v507 = vunpack.c.l.b16 %v469
      %v508 = vunpack.c.l.b16 %v470
      %v509 = vunpack.c.l.b16 %v471
      %v510 = vunpack.c.l.b16 %v472
      %v511 = vunpack.c.l.b16 %v473
      %v512 = vunpack.c.l.b16 %v474
      %v513 = vunpack.c.l.b16 %v475
      %v514 = vunpack.c.l.b16 %v476
      %v515 = vunpack.c.l.b16 %v477
      %v516 = vunpack.c.l.b16 %v478
      %v517 = vunpack.c.l.b16 %v479
      %v518 = vunpack.c.l.b16 %v480
      %v519 = vunpack.c.l.b16 %v481
      %v520 = vunpack.c.l.b16 %v482
      %v521 = vpack.c.b16 %v506, %v505
      %v522 = vpack.c.b16 %v508, %v507
      %v523 = vpack.c.b16 %v510, %v509
      %v524 = vpack.c.b16 %v512, %v511
      %v525 = vpack.c.b16 %v514, %v513
      %v526 = vpack.c.b16 %v516, %v515
      %v527 = vpack.c.b16 %v518, %v517
      %v528 = vpack.c.b16 %v520, %v519
      %537 = vmatprep.subr.bf16.mxu0 0
      %538 = vmatpush1.bf16.msra.mxu0 %v521
      %539 = vmatprep.subr.bf16.mxu0 0
      %540 = vmatpush1.bf16.msra.mxu0 %v522
      %541 = vmatprep.subr.bf16.mxu0 0
      %542 = vmatpush1.bf16.msra.mxu0 %v523
      %543 = vmatprep.subr.bf16.mxu0 0
      %544 = vmatpush1.bf16.msra.mxu0 %v524
      %545 = vmatprep.subr.bf16.mxu0 0
      %546 = vmatpush1.bf16.msra.mxu0 %v525
      %547 = vmatprep.subr.bf16.mxu0 0
      %548 = vmatpush1.bf16.msra.mxu0 %v526
      %549 = vmatprep.subr.bf16.mxu0 0
      %550 = vmatpush1.bf16.msra.mxu0 %v527
      %551 = vmatprep.subr.bf16.mxu0 0
      %552 = vmatpush1.bf16.msra.mxu0 %v528
      %553 = vmatprep.subr.bf16.mxu0 0
      %554 = vmatpush1.bf16.msra.mxu0 0
      %555 = vmatprep.subr.bf16.mxu0 0
      %556 = vmatpush1.bf16.msra.mxu0 0
      %557 = vmatprep.subr.bf16.mxu0 0
      %558 = vmatpush1.bf16.msra.mxu0 0
      %559 = vmatprep.subr.bf16.mxu0 0
      %560 = vmatpush1.bf16.msra.mxu0 0
      %561 = vmatprep.subr.bf16.mxu0 0
      %562 = vmatpush1.bf16.msra.mxu0 0
      %563 = vmatprep.subr.bf16.mxu0 0
      %564 = vmatpush1.bf16.msra.mxu0 0
      %565 = vmatprep.subr.bf16.mxu0 0
      %566 = vmatpush1.bf16.msra.mxu0 0
      %567 = vmatprep.subr.bf16.mxu0 0
      %568 = vmatpush1.bf16.msra.mxu0 0
      %569 = vmatprep.mubr.bf16.mxu0 0
      %570 = vmatmul.mubr.bf16.gmra.mrb[0].mxu0 %v461
      %v571 = vpop.f32.mrb[0].mxu0
      %v572 = vadd.f32 %v488, %v571
      %v573 = vpop.f32.mrb[0].mxu0
      %v574 = vpop.f32.mrb[0].mxu0
      %v575 = vadd.f32 %v488, %v574
      %v576 = vpop.f32.mrb[0].mxu0
      %577 = vmatprep.mubr.bf16.mxu0 0
      %578 = vmatmul.mubr.bf16.gmra.mrb[0].mxu0 %v462
      %v579 = vpop.f32.mrb[0].mxu0
      %v580 = vadd.f32 %v488, %v579
      %v581 = vpop.f32.mrb[0].mxu0
      %v582 = vpop.f32.mrb[0].mxu0
      %v583 = vadd.f32 %v488, %v582
      %v584 = vpop.f32.mrb[0].mxu0
      %585 = vmatprep.mubr.bf16.mxu0 0
      %586 = vmatmul.mubr.bf16.gmra.mrb[0].mxu0 %v463
      %v587 = vpop.f32.mrb[0].mxu0
      %v588 = vadd.f32 %v488, %v587
      %v589 = vpop.f32.mrb[0].mxu0
      %v590 = vpop.f32.mrb[0].mxu0
      %v591 = vadd.f32 %v488, %v590
      %v592 = vpop.f32.mrb[0].mxu0
      %593 = vmatprep.mubr.bf16.mxu0 0
      %594 = vmatmul.mubr.bf16.gmra.mrb[0].mxu0 %v464
      %v595 = vpop.f32.mrb[0].mxu0
      %v596 = vadd.f32 %v488, %v595
      %v597 = vpop.f32.mrb[0].mxu0
      %v598 = vpop.f32.mrb[0].mxu0
      %v599 = vadd.f32 %v488, %v598
      %v600 = vpop.f32.mrb[0].mxu0
      %601 = vmatprep.mubr.bf16.mxu0 0
      %602 = vmatmul.mubr.bf16.gmra.mrb[0].mxu0 %v465
      %v603 = vpop.f32.mrb[0].mxu0
      %v604 = vadd.f32 %v488, %v603
      %v605 = vpop.f32.mrb[0].mxu0
      %v606 = vpop.f32.mrb[0].mxu0
      %v607 = vadd.f32 %v488, %v606
      %v608 = vpop.f32.mrb[0].mxu0
      %609 = vmatprep.mubr.bf16.mxu0 0
      %610 = vmatmul.mubr.bf16.gmra.mrb[0].mxu0 %v466
      %v611 = vpop.f32.mrb[0].mxu0
      %v612 = vadd.f32 %v488, %v611
      %v613 = vpop.f32.mrb[0].mxu0
      %v614 = vpop.f32.mrb[0].mxu0
      %v615 = vadd.f32 %v488, %v614
      %v616 = vpop.f32.mrb[0].mxu0
      %617 = vdwg.mxu0
      %v618 = vmul.f32 %v572, 0.5
      %v619 = vmul.f32 %v575, 0.5
      %v620 = vmul.f32 %v580, 0.5
      %v621 = vmul.f32 %v583, 0.5
      %v622 = vmul.f32 %v588, 0.5
      %v623 = vmul.f32 %v591, 0.5
      %v624 = vmul.f32 %v596, 0.5
      %v625 = vmul.f32 %v599, 0.5
      %v626 = vmul.f32 %v604, 0.5
      %v627 = vmul.f32 %v607, 0.5
      %v628 = vmul.f32 %v612, 0.5
      %v629 = vmul.f32 %v615, 0.5
      %v630 = vmul.f32 %v618, 1.442695
      %v631 = vpow.pop %v630
      %v632 = vmul.f32 %v619, 1.442695
      %v633 = vpow.pop %v632
      %v634 = vmul.f32 %v620, 1.442695
      %v635 = vpow.pop %v634
      %v636 = vmul.f32 %v621, 1.442695
      %v637 = vpow.pop %v636
      %v638 = vmul.f32 %v622, 1.442695
      %v639 = vpow.pop %v638
      %v640 = vmul.f32 %v623, 1.442695
      %v641 = vpow.pop %v640
      %v642 = vmul.f32 %v624, 1.442695
      %v643 = vpow.pop %v642
      %v644 = vmul.f32 %v625, 1.442695
      %v645 = vpow.pop %v644
      %v646 = vmul.f32 %v626, 1.442695
      %v647 = vpow.pop %v646
      %v648 = vmul.f32 %v627, 1.442695
      %v649 = vpow.pop %v648
      %v650 = vmul.f32 %v628, 1.442695
      %v651 = vpow.pop %v650
      %v652 = vmul.f32 %v629, 1.442695
      %v653 = vpow.pop %v652
      %666 = vrot.lane.b32.xlu0 %v631, 126
      %v667 = vpop.permute.xlu0 %666
      %668 = vrot.lane.b32.xlu0 %v633, 126
      %v669 = vpop.permute.xlu0 %668
      %670 = vrot.lane.b32.xlu0 %v635, 126
      %v671 = vpop.permute.xlu0 %670
      %672 = vrot.lane.b32.xlu0 %v637, 126
      %v673 = vpop.permute.xlu0 %672
      %674 = vrot.lane.b32.xlu0 %v639, 126
      %v675 = vpop.permute.xlu0 %674
      %676 = vrot.lane.b32.xlu0 %v641, 126
      %v677 = vpop.permute.xlu0 %676
      %678 = vrot.lane.b32.xlu0 %v643, 126
      %v679 = vpop.permute.xlu0 %678
      %680 = vrot.lane.b32.xlu0 %v645, 126
      %v681 = vpop.permute.xlu0 %680
      %682 = vrot.lane.b32.xlu0 %v647, 126
      %v683 = vpop.permute.xlu0 %682
      %684 = vrot.lane.b32.xlu0 %v649, 126
      %v685 = vpop.permute.xlu0 %684
      %686 = vrot.lane.b32.xlu0 %v651, 126
      %v687 = vpop.permute.xlu0 %686
      %688 = vrot.lane.b32.xlu0 %v653, 126
      %v689 = vpop.permute.xlu0 %688
      %v702 = vmul.f32 %v148, %v667
      %v703 = vmul.f32 %v149, %v669
      %v704 = vmul.f32 %v150, %v671
      %v705 = vmul.f32 %v151, %v673
      %v706 = vmul.f32 %v152, %v675
      %v707 = vmul.f32 %v153, %v677
      %v708 = vmul.f32 %v154, %v679
      %v709 = vmul.f32 %v155, %v681
      %v710 = vmul.f32 %v156, %v683
      %v711 = vmul.f32 %v157, %v685
      %v712 = vmul.f32 %v158, %v687
      %v713 = vmul.f32 %v159, %v689
      %726 = vrot.lane.b32.xlu0 %v572, 115
      %v727 = vpop.permute.xlu0 %726
      %728 = vrot.lane.b32.xlu0 %v575, 115
      %v729 = vpop.permute.xlu0 %728
      %730 = vrot.lane.b32.xlu0 %v580, 115
      %v731 = vpop.permute.xlu0 %730
      %732 = vrot.lane.b32.xlu0 %v583, 115
      %v733 = vpop.permute.xlu0 %732
      %734 = vrot.lane.b32.xlu0 %v588, 115
      %v735 = vpop.permute.xlu0 %734
      %736 = vrot.lane.b32.xlu0 %v591, 115
      %v737 = vpop.permute.xlu0 %736
      %738 = vrot.lane.b32.xlu0 %v596, 115
      %v739 = vpop.permute.xlu0 %738
      %740 = vrot.lane.b32.xlu0 %v599, 115
      %v741 = vpop.permute.xlu0 %740
      %742 = vrot.lane.b32.xlu0 %v604, 115
      %v743 = vpop.permute.xlu0 %742
      %744 = vrot.lane.b32.xlu0 %v607, 115
      %v745 = vpop.permute.xlu0 %744
      %746 = vrot.lane.b32.xlu0 %v612, 115
      %v747 = vpop.permute.xlu0 %746
      %748 = vrot.lane.b32.xlu0 %v615, 115
      %v749 = vpop.permute.xlu0 %748
      %774 = vrot.lane.b32.xlu0 %v702, 117
      %v775 = vpop.permute.xlu0 %774
      %776 = vrot.lane.b32.xlu0 %v703, 117
      %v777 = vpop.permute.xlu0 %776
      %778 = vrot.lane.b32.xlu0 %v704, 117
      %v779 = vpop.permute.xlu0 %778
      %780 = vrot.lane.b32.xlu0 %v705, 117
      %v781 = vpop.permute.xlu0 %780
      %782 = vrot.lane.b32.xlu0 %v706, 117
      %v783 = vpop.permute.xlu0 %782
      %784 = vrot.lane.b32.xlu0 %v707, 117
      %v785 = vpop.permute.xlu0 %784
      %786 = vrot.lane.b32.xlu0 %v708, 117
      %v787 = vpop.permute.xlu0 %786
      %788 = vrot.lane.b32.xlu0 %v709, 117
      %v789 = vpop.permute.xlu0 %788
      %790 = vrot.lane.b32.xlu0 %v710, 117
      %v791 = vpop.permute.xlu0 %790
      %792 = vrot.lane.b32.xlu0 %v711, 117
      %v793 = vpop.permute.xlu0 %792
      %794 = vrot.lane.b32.xlu0 %v712, 117
      %v795 = vpop.permute.xlu0 %794
      %796 = vrot.lane.b32.xlu0 %v713, 117
      %v797 = vpop.permute.xlu0 %796
      %vm810 = vcmask 15360
      %v811 = vsel %vm810, %v727, %v775
      %v812 = vsel %vm810, %v729, %v777
      %v813 = vsel %vm810, %v731, %v779
      %v814 = vsel %vm810, %v733, %v781
      %v815 = vsel %vm810, %v735, %v783
      %v816 = vsel %vm810, %v737, %v785
      %v817 = vsel %vm810, %v739, %v787
      %v818 = vsel %vm810, %v741, %v789
      %v819 = vsel %vm810, %v743, %v791
      %v820 = vsel %vm810, %v745, %v793
      %v821 = vsel %vm810, %v747, %v795
      %v822 = vsel %vm810, %v749, %v797
      %v823 = vpack.c.bf16 %v812, %v811
      %v824 = vpack.c.bf16 %v814, %v813
      %v825 = vpack.c.bf16 %v816, %v815
      %v826 = vpack.c.bf16 %v818, %v817
      %v827 = vpack.c.bf16 %v820, %v819
      %v828 = vpack.c.bf16 %v822, %v821
      %v829 = vld [vmem:[%s1 + $0xa0] sm:$0x3]
      %v830 = vld [vmem:[%s1 + $0xa8] sm:$0x1]
      %v831 = vunpack.c.l.bf16 %v830
      %v832 = vlaneseq
      %v833 = vshrl.u32 %v832, 7
      %v834 = vsub.s32 0, %v833
      %v835 = vrot.slane %v831, %v834
      %vm836 = vcmask 31744
      %v838 = vsel %vm836, %v823, 0
      %v841 = vsel %vm836, %v824, 0
      %v844 = vsel %vm836, %v825, 0
      %v847 = vsel %vm836, %v826, 0
      %v850 = vsel %vm836, %v827, 0
      %v853 = vsel %vm836, %v828, 0
      %vm855 = vcmask 1041408
      %v857 = vsel %vm855, %v829, 0
      %859 = vmatprep.subr.bf16.mxu0 0
      %860 = vmatpush1.bf16.msra.mxu0 %v857
      %861 = vmatprep.subr.bf16.mxu0 0
      %862 = vmatpush1.bf16.msra.mxu0 0
      %863 = vmatprep.subr.bf16.mxu0 0
      %864 = vmatpush1.bf16.msra.mxu0 0
      %865 = vmatprep.subr.bf16.mxu0 0
      %866 = vmatpush1.bf16.msra.mxu0 0
      %867 = vmatprep.subr.bf16.mxu0 0
      %868 = vmatpush1.bf16.msra.mxu0 0
      %869 = vmatprep.subr.bf16.mxu0 0
      %870 = vmatpush1.bf16.msra.mxu0 0
      %871 = vmatprep.subr.bf16.mxu0 0
      %872 = vmatpush1.bf16.msra.mxu0 0
      %873 = vmatprep.subr.bf16.mxu0 0
      %874 = vmatpush1.bf16.msra.mxu0 0
      %875 = vmatprep.subr.bf16.mxu0 0
      %876 = vmatpush1.bf16.msra.mxu0 0
      %877 = vmatprep.subr.bf16.mxu0 0
      %878 = vmatpush1.bf16.msra.mxu0 0
      %879 = vmatprep.subr.bf16.mxu0 0
      %880 = vmatpush1.bf16.msra.mxu0 0
      %881 = vmatprep.subr.bf16.mxu0 0
      %882 = vmatpush1.bf16.msra.mxu0 0
      %883 = vmatprep.subr.bf16.mxu0 0
      %884 = vmatpush1.bf16.msra.mxu0 0
      %885 = vmatprep.subr.bf16.mxu0 0
      %886 = vmatpush1.bf16.msra.mxu0 0
      %887 = vmatprep.subr.bf16.mxu0 0
      %888 = vmatpush1.bf16.msra.mxu0 0
      %889 = vmatprep.subr.bf16.mxu0 0
      %890 = vmatpush1.bf16.msra.mxu0 0
      %891 = vmatprep.mubr.bf16.mxu0 0
      %892 = vmatmul.mubr.bf16.gmra.mrb[0].mxu0 %v838
      %v893 = vpop.f32.mrb[0].mxu0
      %v894 = vadd.f32 %v835, %v893
      %v895 = vpop.f32.mrb[0].mxu0
      %v896 = vpop.f32.mrb[0].mxu0
      %v897 = vadd.f32 %v835, %v896
      %v898 = vpop.f32.mrb[0].mxu0
      %899 = vmatprep.mubr.bf16.mxu0 0
      %900 = vmatmul.mubr.bf16.gmra.mrb[0].mxu0 %v841
      %v901 = vpop.f32.mrb[0].mxu0
      %v902 = vadd.f32 %v835, %v901
      %v903 = vpop.f32.mrb[0].mxu0
      %v904 = vpop.f32.mrb[0].mxu0
      %v905 = vadd.f32 %v835, %v904
      %v906 = vpop.f32.mrb[0].mxu0
      %907 = vmatprep.mubr.bf16.mxu0 0
      %908 = vmatmul.mubr.bf16.gmra.mrb[0].mxu0 %v844
      %v909 = vpop.f32.mrb[0].mxu0
      %v910 = vadd.f32 %v835, %v909
      %v911 = vpop.f32.mrb[0].mxu0
      %v912 = vpop.f32.mrb[0].mxu0
      %v913 = vadd.f32 %v835, %v912
      %v914 = vpop.f32.mrb[0].mxu0
      %915 = vmatprep.mubr.bf16.mxu0 0
      %916 = vmatmul.mubr.bf16.gmra.mrb[0].mxu0 %v847
      %v917 = vpop.f32.mrb[0].mxu0
      %v918 = vadd.f32 %v835, %v917
      %v919 = vpop.f32.mrb[0].mxu0
      %v920 = vpop.f32.mrb[0].mxu0
      %v921 = vadd.f32 %v835, %v920
      %v922 = vpop.f32.mrb[0].mxu0
      %923 = vmatprep.mubr.bf16.mxu0 0
      %924 = vmatmul.mubr.bf16.gmra.mrb[0].mxu0 %v850
      %v925 = vpop.f32.mrb[0].mxu0
      %v926 = vadd.f32 %v835, %v925
      %v927 = vpop.f32.mrb[0].mxu0
      %v928 = vpop.f32.mrb[0].mxu0
      %v929 = vadd.f32 %v835, %v928
      %v930 = vpop.f32.mrb[0].mxu0
      %931 = vmatprep.mubr.bf16.mxu0 0
      %932 = vmatmul.mubr.bf16.gmra.mrb[0].mxu0 %v853
      %v933 = vpop.f32.mrb[0].mxu0
      %v934 = vadd.f32 %v835, %v933
      %v935 = vpop.f32.mrb[0].mxu0
      %v936 = vpop.f32.mrb[0].mxu0
      %v937 = vadd.f32 %v835, %v936
      %v938 = vpop.f32.mrb[0].mxu0
      %939 = vdwg.mxu0
      %v940 = vmax.f32 %v894, 0.0
      %v941 = vmax.f32 %v897, 0.0
      %v942 = vmax.f32 %v902, 0.0
      %v943 = vmax.f32 %v905, 0.0
      %v944 = vmax.f32 %v910, 0.0
      %v945 = vmax.f32 %v913, 0.0
      %v946 = vmax.f32 %v918, 0.0
      %v947 = vmax.f32 %v921, 0.0
      %v948 = vmax.f32 %v926, 0.0
      %v949 = vmax.f32 %v929, 0.0
      %v950 = vmax.f32 %v934, 0.0
      %v951 = vmax.f32 %v937, 0.0
      %v952 = vpack.c.bf16 %v941, %v940
      %v953 = vpack.c.bf16 %v943, %v942
      %v954 = vpack.c.bf16 %v945, %v944
      %v955 = vpack.c.bf16 %v947, %v946
      %v956 = vpack.c.bf16 %v949, %v948
      %v957 = vpack.c.bf16 %v951, %v950
      %v958 = vld [vmem:[%s1 + $0xb0] sm:$0xf]
      %v959 = vld [vmem:[%s1 + $0xb4] sm:$0xf]
      %v960 = vld [vmem:[%s1 + $0xb8] sm:$0xf]
      %v961 = vld [vmem:[%s1 + $0xbc] sm:$0xf]
      %v962 = vld [vmem:[%s1 + $0xc0] sm:$0xf]
      %v963 = vld [vmem:[%s1 + $0xc4] sm:$0xf]
      %v964 = vld [vmem:[%s1 + $0xc8] sm:$0xf]
      %v965 = vld [vmem:[%s1 + $0xcc] sm:$0xf]
      %v966 = vld [vmem:[%s1 + $0xd0] sm:$0xf]
      %v967 = vld [vmem:[%s1 + $0xd4] sm:$0xf]
      %v968 = vld [vmem:[%s1 + $0xd8] sm:$0xf]
      %v969 = vld [vmem:[%s1 + $0xdc] sm:$0xf]
      %v970 = vld [vmem:[%s1 + $0xe0] sm:$0xf]
      %v971 = vld [vmem:[%s1 + $0xe4] sm:$0xf]
      %v972 = vld [vmem:[%s1 + $0xe8] sm:$0xf]
      %v973 = vld [vmem:[%s1 + $0xec] sm:$0xf]
      %v974 = vld [vmem:[%s1 + $0xf0] sm:$0x1]
      %v975 = vunpack.c.l.bf16 %v974
      %v976 = vlaneseq
      %v977 = vshrl.u32 %v976, 7
      %v978 = vsub.s32 0, %v977
      %v979 = vrot.slane %v975, %v978
      %v996 = vunpack.c.l.b16 %v958
      %v997 = vunpack.c.l.b16 %v959
      %v998 = vunpack.c.l.b16 %v960
      %v999 = vunpack.c.l.b16 %v961
      %v1000 = vunpack.c.l.b16 %v962
      %v1001 = vunpack.c.l.b16 %v963
      %v1002 = vunpack.c.l.b16 %v964
      %v1003 = vunpack.c.l.b16 %v965
      %v1004 = vunpack.c.l.b16 %v966
      %v1005 = vunpack.c.l.b16 %v967
      %v1006 = vunpack.c.l.b16 %v968
      %v1007 = vunpack.c.l.b16 %v969
      %v1008 = vunpack.c.l.b16 %v970
      %v1009 = vunpack.c.l.b16 %v971
      %v1010 = vunpack.c.l.b16 %v972
      %v1011 = vunpack.c.l.b16 %v973
      %v1012 = vpack.c.b16 %v997, %v996
      %v1013 = vpack.c.b16 %v999, %v998
      %v1014 = vpack.c.b16 %v1001, %v1000
      %v1015 = vpack.c.b16 %v1003, %v1002
      %v1016 = vpack.c.b16 %v1005, %v1004
      %v1017 = vpack.c.b16 %v1007, %v1006
      %v1018 = vpack.c.b16 %v1009, %v1008
      %v1019 = vpack.c.b16 %v1011, %v1010
      %1028 = vmatprep.subr.bf16.mxu0 0
      %1029 = vmatpush1.bf16.msra.mxu0 %v1012
      %1030 = vmatprep.subr.bf16.mxu0 0
      %1031 = vmatpush1.bf16.msra.mxu0 %v1013
      %1032 = vmatprep.subr.bf16.mxu0 0
      %1033 = vmatpush1.bf16.msra.mxu0 %v1014
      %1034 = vmatprep.subr.bf16.mxu0 0
      %1035 = vmatpush1.bf16.msra.mxu0 %v1015
      %1036 = vmatprep.subr.bf16.mxu0 0
      %1037 = vmatpush1.bf16.msra.mxu0 %v1016
      %1038 = vmatprep.subr.bf16.mxu0 0
      %1039 = vmatpush1.bf16.msra.mxu0 %v1017
      %1040 = vmatprep.subr.bf16.mxu0 0
      %1041 = vmatpush1.bf16.msra.mxu0 %v1018
      %1042 = vmatprep.subr.bf16.mxu0 0
      %1043 = vmatpush1.bf16.msra.mxu0 %v1019
      %1044 = vmatprep.subr.bf16.mxu0 0
      %1045 = vmatpush1.bf16.msra.mxu0 0
      %1046 = vmatprep.subr.bf16.mxu0 0
      %1047 = vmatpush1.bf16.msra.mxu0 0
      %1048 = vmatprep.subr.bf16.mxu0 0
      %1049 = vmatpush1.bf16.msra.mxu0 0
      %1050 = vmatprep.subr.bf16.mxu0 0
      %1051 = vmatpush1.bf16.msra.mxu0 0
      %1052 = vmatprep.subr.bf16.mxu0 0
      %1053 = vmatpush1.bf16.msra.mxu0 0
      %1054 = vmatprep.subr.bf16.mxu0 0
      %1055 = vmatpush1.bf16.msra.mxu0 0
      %1056 = vmatprep.subr.bf16.mxu0 0
      %1057 = vmatpush1.bf16.msra.mxu0 0
      %1058 = vmatprep.subr.bf16.mxu0 0
      %1059 = vmatpush1.bf16.msra.mxu0 0
      %1060 = vmatprep.mubr.bf16.mxu0 0
      %1061 = vmatmul.mubr.bf16.gmra.mrb[0].mxu0 %v952
      %v1062 = vpop.f32.mrb[0].mxu0
      %v1063 = vadd.f32 %v979, %v1062
      %v1064 = vpop.f32.mrb[0].mxu0
      %v1065 = vpop.f32.mrb[0].mxu0
      %v1066 = vadd.f32 %v979, %v1065
      %v1067 = vpop.f32.mrb[0].mxu0
      %1068 = vmatprep.mubr.bf16.mxu0 0
      %1069 = vmatmul.mubr.bf16.gmra.mrb[0].mxu0 %v953
      %v1070 = vpop.f32.mrb[0].mxu0
      %v1071 = vadd.f32 %v979, %v1070
      %v1072 = vpop.f32.mrb[0].mxu0
      %v1073 = vpop.f32.mrb[0].mxu0
      %v1074 = vadd.f32 %v979, %v1073
      %v1075 = vpop.f32.mrb[0].mxu0
      %1076 = vmatprep.mubr.bf16.mxu0 0
      %1077 = vmatmul.mubr.bf16.gmra.mrb[0].mxu0 %v954
      %v1078 = vpop.f32.mrb[0].mxu0
      %v1079 = vadd.f32 %v979, %v1078
      %v1080 = vpop.f32.mrb[0].mxu0
      %v1081 = vpop.f32.mrb[0].mxu0
      %v1082 = vadd.f32 %v979, %v1081
      %v1083 = vpop.f32.mrb[0].mxu0
      %1084 = vmatprep.mubr.bf16.mxu0 0
      %1085 = vmatmul.mubr.bf16.gmra.mrb[0].mxu0 %v955
      %v1086 = vpop.f32.mrb[0].mxu0
      %v1087 = vadd.f32 %v979, %v1086
      %v1088 = vpop.f32.mrb[0].mxu0
      %v1089 = vpop.f32.mrb[0].mxu0
      %v1090 = vadd.f32 %v979, %v1089
      %v1091 = vpop.f32.mrb[0].mxu0
      %1092 = vmatprep.mubr.bf16.mxu0 0
      %1093 = vmatmul.mubr.bf16.gmra.mrb[0].mxu0 %v956
      %v1094 = vpop.f32.mrb[0].mxu0
      %v1095 = vadd.f32 %v979, %v1094
      %v1096 = vpop.f32.mrb[0].mxu0
      %v1097 = vpop.f32.mrb[0].mxu0
      %v1098 = vadd.f32 %v979, %v1097
      %v1099 = vpop.f32.mrb[0].mxu0
      %1100 = vmatprep.mubr.bf16.mxu0 0
      %1101 = vmatmul.mubr.bf16.gmra.mrb[0].mxu0 %v957
      %v1102 = vpop.f32.mrb[0].mxu0
      %v1103 = vadd.f32 %v979, %v1102
      %v1104 = vpop.f32.mrb[0].mxu0
      %v1105 = vpop.f32.mrb[0].mxu0
      %v1106 = vadd.f32 %v979, %v1105
      %v1107 = vpop.f32.mrb[0].mxu0
      %1108 = vdwg.mxu0
      %v1109 = vmax.f32 %v1063, 0.0
      %v1110 = vmax.f32 %v1066, 0.0
      %v1111 = vmax.f32 %v1071, 0.0
      %v1112 = vmax.f32 %v1074, 0.0
      %v1113 = vmax.f32 %v1079, 0.0
      %v1114 = vmax.f32 %v1082, 0.0
      %v1115 = vmax.f32 %v1087, 0.0
      %v1116 = vmax.f32 %v1090, 0.0
      %v1117 = vmax.f32 %v1095, 0.0
      %v1118 = vmax.f32 %v1098, 0.0
      %v1119 = vmax.f32 %v1103, 0.0
      %v1120 = vmax.f32 %v1106, 0.0
      %v1121 = vpack.c.bf16 %v1110, %v1109
      %v1122 = vpack.c.bf16 %v1112, %v1111
      %v1123 = vpack.c.bf16 %v1114, %v1113
      %v1124 = vpack.c.bf16 %v1116, %v1115
      %v1125 = vpack.c.bf16 %v1118, %v1117
      %v1126 = vpack.c.bf16 %v1120, %v1119
      %v1127 = vld [vmem:[%s1 + $0xf8] sm:$0xf]
      %v1128 = vld [vmem:[%s1 + $0xfc] sm:$0xf]
      %v1129 = vld [vmem:[%s1 + $0x100] sm:$0xf]
      %v1130 = vld [vmem:[%s1 + $0x104] sm:$0xf]
      %v1131 = vld [vmem:[%s1 + $0x108] sm:$0xf]
      %v1132 = vld [vmem:[%s1 + $0x10c] sm:$0xf]
      %v1133 = vld [vmem:[%s1 + $0x110] sm:$0xf]
      %v1134 = vld [vmem:[%s1 + $0x114] sm:$0xf]
      %v1135 = vld [vmem:[%s1 + $0x118] sm:$0xf]
      %v1136 = vld [vmem:[%s1 + $0x11c] sm:$0xf]
      %v1137 = vld [vmem:[%s1 + $0x120] sm:$0xf]
      %v1138 = vld [vmem:[%s1 + $0x124] sm:$0xf]
      %v1139 = vld [vmem:[%s1 + $0x128] sm:$0xf]
      %v1140 = vld [vmem:[%s1 + $0x12c] sm:$0xf]
      %v1141 = vld [vmem:[%s1 + $0x130] sm:$0xf]
      %v1142 = vld [vmem:[%s1 + $0x134] sm:$0xf]
      %v1143 = vld [vmem:[%s1 + $0x138] sm:$0x1]
      %v1144 = vunpack.c.l.bf16 %v1143
      %v1145 = vlaneseq
      %v1146 = vshrl.u32 %v1145, 7
      %v1147 = vsub.s32 0, %v1146
      %v1148 = vrot.slane %v1144, %v1147
      %v1165 = vunpack.c.l.b16 %v1127
      %v1166 = vunpack.c.l.b16 %v1128
      %v1167 = vunpack.c.l.b16 %v1129
      %v1168 = vunpack.c.l.b16 %v1130
      %v1169 = vunpack.c.l.b16 %v1131
      %v1170 = vunpack.c.l.b16 %v1132
      %v1171 = vunpack.c.l.b16 %v1133
      %v1172 = vunpack.c.l.b16 %v1134
      %v1173 = vunpack.c.l.b16 %v1135
      %v1174 = vunpack.c.l.b16 %v1136
      %v1175 = vunpack.c.l.b16 %v1137
      %v1176 = vunpack.c.l.b16 %v1138
      %v1177 = vunpack.c.l.b16 %v1139
      %v1178 = vunpack.c.l.b16 %v1140
      %v1179 = vunpack.c.l.b16 %v1141
      %v1180 = vunpack.c.l.b16 %v1142
      %v1181 = vpack.c.b16 %v1166, %v1165
      %v1182 = vpack.c.b16 %v1168, %v1167
      %v1183 = vpack.c.b16 %v1170, %v1169
      %v1184 = vpack.c.b16 %v1172, %v1171
      %v1185 = vpack.c.b16 %v1174, %v1173
      %v1186 = vpack.c.b16 %v1176, %v1175
      %v1187 = vpack.c.b16 %v1178, %v1177
      %v1188 = vpack.c.b16 %v1180, %v1179
      %1197 = vmatprep.subr.bf16.mxu0 0
      %1198 = vmatpush1.bf16.msra.mxu0 %v1181
      %1199 = vmatprep.subr.bf16.mxu0 0
      %1200 = vmatpush1.bf16.msra.mxu0 %v1182
      %1201 = vmatprep.subr.bf16.mxu0 0
      %1202 = vmatpush1.bf16.msra.mxu0 %v1183
      %1203 = vmatprep.subr.bf16.mxu0 0
      %1204 = vmatpush1.bf16.msra.mxu0 %v1184
      %1205 = vmatprep.subr.bf16.mxu0 0
      %1206 = vmatpush1.bf16.msra.mxu0 %v1185
      %1207 = vmatprep.subr.bf16.mxu0 0
      %1208 = vmatpush1.bf16.msra.mxu0 %v1186
      %1209 = vmatprep.subr.bf16.mxu0 0
      %1210 = vmatpush1.bf16.msra.mxu0 %v1187
      %1211 = vmatprep.subr.bf16.mxu0 0
      %1212 = vmatpush1.bf16.msra.mxu0 %v1188
      %1213 = vmatprep.subr.bf16.mxu0 0
      %1214 = vmatpush1.bf16.msra.mxu0 0
      %1215 = vmatprep.subr.bf16.mxu0 0
      %1216 = vmatpush1.bf16.msra.mxu0 0
      %1217 = vmatprep.subr.bf16.mxu0 0
      %1218 = vmatpush1.bf16.msra.mxu0 0
      %1219 = vmatprep.subr.bf16.mxu0 0
      %1220 = vmatpush1.bf16.msra.mxu0 0
      %1221 = vmatprep.subr.bf16.mxu0 0
      %1222 = vmatpush1.bf16.msra.mxu0 0
      %1223 = vmatprep.subr.bf16.mxu0 0
      %1224 = vmatpush1.bf16.msra.mxu0 0
      %1225 = vmatprep.subr.bf16.mxu0 0
      %1226 = vmatpush1.bf16.msra.mxu0 0
      %1227 = vmatprep.subr.bf16.mxu0 0
      %1228 = vmatpush1.bf16.msra.mxu0 0
      %1229 = vmatprep.mubr.bf16.mxu0 0
      %1230 = vmatmul.mubr.bf16.gmra.mrb[0].mxu0 %v1121
      %v1231 = vpop.f32.mrb[0].mxu0
      %v1232 = vadd.f32 %v1148, %v1231
      %v1233 = vpop.f32.mrb[0].mxu0
      %v1234 = vpop.f32.mrb[0].mxu0
      %v1235 = vadd.f32 %v1148, %v1234
      %v1236 = vpop.f32.mrb[0].mxu0
      %1237 = vmatprep.mubr.bf16.mxu0 0
      %1238 = vmatmul.mubr.bf16.gmra.mrb[0].mxu0 %v1122
      %v1239 = vpop.f32.mrb[0].mxu0
      %v1240 = vadd.f32 %v1148, %v1239
      %v1241 = vpop.f32.mrb[0].mxu0
      %v1242 = vpop.f32.mrb[0].mxu0
      %v1243 = vadd.f32 %v1148, %v1242
      %v1244 = vpop.f32.mrb[0].mxu0
      %1245 = vmatprep.mubr.bf16.mxu0 0
      %1246 = vmatmul.mubr.bf16.gmra.mrb[0].mxu0 %v1123
      %v1247 = vpop.f32.mrb[0].mxu0
      %v1248 = vadd.f32 %v1148, %v1247
      %v1249 = vpop.f32.mrb[0].mxu0
      %v1250 = vpop.f32.mrb[0].mxu0
      %v1251 = vadd.f32 %v1148, %v1250
      %v1252 = vpop.f32.mrb[0].mxu0
      %1253 = vmatprep.mubr.bf16.mxu0 0
      %1254 = vmatmul.mubr.bf16.gmra.mrb[0].mxu0 %v1124
      %v1255 = vpop.f32.mrb[0].mxu0
      %v1256 = vadd.f32 %v1148, %v1255
      %v1257 = vpop.f32.mrb[0].mxu0
      %v1258 = vpop.f32.mrb[0].mxu0
      %v1259 = vadd.f32 %v1148, %v1258
      %v1260 = vpop.f32.mrb[0].mxu0
      %1261 = vmatprep.mubr.bf16.mxu0 0
      %1262 = vmatmul.mubr.bf16.gmra.mrb[0].mxu0 %v1125
      %v1263 = vpop.f32.mrb[0].mxu0
      %v1264 = vadd.f32 %v1148, %v1263
      %v1265 = vpop.f32.mrb[0].mxu0
      %v1266 = vpop.f32.mrb[0].mxu0
      %v1267 = vadd.f32 %v1148, %v1266
      %v1268 = vpop.f32.mrb[0].mxu0
      %1269 = vmatprep.mubr.bf16.mxu0 0
      %1270 = vmatmul.mubr.bf16.gmra.mrb[0].mxu0 %v1126
      %v1271 = vpop.f32.mrb[0].mxu0
      %v1272 = vadd.f32 %v1148, %v1271
      %v1273 = vpop.f32.mrb[0].mxu0
      %v1274 = vpop.f32.mrb[0].mxu0
      %v1275 = vadd.f32 %v1148, %v1274
      %v1276 = vpop.f32.mrb[0].mxu0
      %1277 = vdwg.mxu0
      %v1278 = vadd.f32 %v1232, %v572
      %v1279 = vadd.f32 %v1235, %v575
      %v1280 = vadd.f32 %v1240, %v580
      %v1281 = vadd.f32 %v1243, %v583
      %v1282 = vadd.f32 %v1248, %v588
      %v1283 = vadd.f32 %v1251, %v591
      %v1284 = vadd.f32 %v1256, %v596
      %v1285 = vadd.f32 %v1259, %v599
      %v1286 = vadd.f32 %v1264, %v604
      %v1287 = vadd.f32 %v1267, %v607
      %v1288 = vadd.f32 %v1272, %v612
      %v1289 = vadd.f32 %v1275, %v615
      %1290 = vst [vmem:[%s145] sm:$0xff] %v1278
      %1291 = vst [vmem:[%s145 + $0x8] sm:$0xff] %v1279
      %1292 = vst [vmem:[%s145 + $0x10] sm:$0xff] %v1280
      %1293 = vst [vmem:[%s145 + $0x18] sm:$0xff] %v1281
      %1294 = vst [vmem:[%s145 + $0x20] sm:$0xff] %v1282
      %1295 = vst [vmem:[%s145 + $0x28] sm:$0xff] %v1283
      %1296 = vst [vmem:[%s145 + $0x30] sm:$0xff] %v1284
      %1297 = vst [vmem:[%s145 + $0x38] sm:$0xff] %v1285
      %1298 = vst [vmem:[%s145 + $0x40] sm:$0xff] %v1286
      %1299 = vst [vmem:[%s145 + $0x48] sm:$0xff] %v1287
      %1300 = vst [vmem:[%s145 + $0x50] sm:$0xff] %v1288
      %1301 = vst [vmem:[%s145 + $0x58] sm:$0xff] %v1289
      %s1302 = smul.u32 12, %s13
      %p1303 = scmp.lt.s32.totalorder %s1302, 23
      %s1304 = scalar_select %p1303, %s1302, 23
      %s1305 = smul.addr %s1304, 8
      %s1306 = scalar_lea.vmem %s2, %s1305
      // Predicated region
      $region29: #{vae_forward.1} parent=27 // pred_check
        %p1307 = pneg %p78
      $region30: #{vae_forward.1} parent=27 // pred_check_branch
        %1309 = sbr.rel (%p1307) target = $region32
      $region31: #{vae_forward.1} parent=27 // pred_region
        %s1310 = smul.u32 12, %s13
      $region32: #{vae_forward.1} parent=27 // pred_fallthru
        _
    $region28: #{vae_forward.1} parent=5 // pred_fallthru
      _
    %p1311 = scmp.le.s32.totalorder 2, %s8
    // Predicated region
    $region33: #{vae_forward.1} parent=5 // pred_check
      %p1312 = pneg %p1311
    $region34: #{vae_forward.1} parent=5 // pred_check_branch
      %1314 = sbr.rel (%p1312) target = $region36
    $region35: #{vae_forward.1} parent=5 // pred_region
      %s1315 = ssub.s32 %s8, 2
      // Predicated region
      $region37: #{vae_forward.1} parent=35 // pred_check
        %p1316 = pneg %p84
      $region38: #{vae_forward.1} parent=35 // pred_check_branch
        %1318 = sbr.rel (%p1316) target = $region40
      $region39: #{vae_forward.1} parent=35 // pred_region
        %s1319 = smul.u32 12, %s14
        %p1320 = scmp.lt.s32.totalorder %s1319, 23
        %s1321 = scalar_select %p1320, %s1319, 23
        %s1322 = smul.addr %s1321, 8
        %s1323 = scalar_lea.vmem %s2, %s1322
      $region40: #{vae_forward.1} parent=35 // pred_fallthru
        _
    $region36: #{vae_forward.1} parent=5 // pred_fallthru
      _
  $region6: #{vae_forward.1} parent=0 // loop_footer
    %s12 = sadd.s32 1, %s8
  $region7: #{vae_forward.1} parent=0 // loop_footer_branch
    %7 = sbr.rel target = $region3
  $region8: #{vae_forward.1} parent=0 // loop_exit
    _

</llo_original>
